<compile_context>
chip_gen: v5e
topology: v5e:2x2
jax: 0.10.0
libtpu: 0.0.40
codegen_flags: <defaults>
</compile_context>

<pallas_src>
import math

import jax
import jax.numpy as jnp
from jax.experimental import pallas as pl
from jax.experimental.pallas import tpu as pltpu


def _if_step_kernel(thr_ref, x_ref, s_ref, spikes_ref, new_state_ref):
    # thr_ref: (1, 1) scalar in SMEM.
    thr = thr_ref[0, 0]
    state = s_ref[...] + x_ref[...]
    spikes = (state > thr).astype(state.dtype)
    spikes_ref[...] = spikes
    new_state_ref[...] = state - spikes * thr


def _round_up(x, m):
    return ((x + m - 1) // m) * m


def _round_down(x, m):
    return max(m, (x // m) * m)


def _choose_tm(rows, lane, itemsize):
    """Row tile: blocks of ~256 KiB..2 MiB, aiming for ~8 grid steps."""
    TINY_BYTES = 1 << 20            # whole tensor <= 1 MiB -> single block
    TARGET_BLOCK_BYTES = 2 << 20    # per-buffer block target
    MIN_BLOCK_BYTES = 256 << 10     # never shrink blocks below this
    TARGET_STEPS = 8

    row_bytes = lane * itemsize
    if rows * row_bytes <= TINY_BYTES:
        # Single full block: block_shape == array shape bypasses (8,128) rule.
        return rows
    tm_big = _round_down(TARGET_BLOCK_BYTES // row_bytes, 8)
    tm_floor = _round_down(MIN_BLOCK_BYTES // row_bytes, 8)
    tm_steps = _round_up(pl.cdiv(rows, TARGET_STEPS), 8)
    tm = min(tm_big, max(tm_steps, tm_floor))
    return min(tm, rows)


def _run(x2, s2, thr, tm, lane, rows, dtype):
    grid = (pl.cdiv(rows, tm),)
    return pl.pallas_call(
        _if_step_kernel,
        out_shape=(
            jax.ShapeDtypeStruct((rows, lane), dtype),
            jax.ShapeDtypeStruct((rows, lane), dtype),
        ),
        grid=grid,
        in_specs=[
            pl.BlockSpec(memory_space=pltpu.SMEM),        # threshold scalar
            pl.BlockSpec((tm, lane), lambda i: (i, 0)),   # input
            pl.BlockSpec((tm, lane), lambda i: (i, 0)),   # state
        ],
        out_specs=(
            pl.BlockSpec((tm, lane), lambda i: (i, 0)),   # spikes
            pl.BlockSpec((tm, lane), lambda i: (i, 0)),   # new state
        ),
        compiler_params=pltpu.CompilerParams(
            dimension_semantics=("parallel",),
            vmem_limit_bytes=32 << 20,
        ),
    )(thr, x2, s2)


def fast_if_cell(input_tensor, state, threshold):
    """Pallas implementation of FastIFCell.forward.

    Args:
      input_tensor: (B, C, H, W) float array (NCHW, same as PyTorch).
      state:        (B, C, H, W) float array, same shape/dtype as input.
      threshold:    scalar (python float or traced 0-d value).

    Returns:
      (spikes, new_state), each (B, C, H, W), same dtype as state.

    Note: for in-place recurrent state update, donate `state` in the caller
    (e.g. jax.jit(step, donate_argnums=1)); we intentionally do not alias it
    inside the pallas_call to avoid XLA's defensive copy of live arguments.
    """
    assert input_tensor.shape == state.shape
    orig_shape = input_tensor.shape
    dtype = state.dtype
    total = math.prod(orig_shape)
    itemsize = jnp.dtype(dtype).itemsize

    # NOTE: threshold is cast to the state dtype before the compare; identical
    # to PyTorch for f32, may differ by one ULP at the boundary for bf16/fp16.
    thr = jnp.asarray(threshold, dtype=dtype).reshape(1, 1)

    if total % 128 == 0:
        # Copy-free path: lane-dense reshape (bitcast) in and out, no padding.
        lane = next(l for l in (1024, 512, 256, 128) if total % l == 0)
        rows = total // lane
        tm = _choose_tm(rows, lane, itemsize)
        x2 = input_tensor.reshape(rows, lane)
        s2 = state.reshape(rows, lane)
        spikes2, new_state2 = _run(x2, s2, thr, tm, lane, rows, dtype)
        return spikes2.reshape(orig_shape), new_state2.reshape(orig_shape)

    if total <= 16384:
        # Tiny, non-128-aligned: single (1, total) full-extent block (bypasses
        # the (8,128) divisibility rule); still copy-free.
        x2 = input_tensor.reshape(1, total)
        s2 = state.reshape(1, total)
        spikes2, new_state2 = _run(x2, s2, thr, 1, total, 1, dtype)
        return spikes2.reshape(orig_shape), new_state2.reshape(orig_shape)

    # Fallback (rare shapes): large and not 128-divisible -> pad the flat view
    # to a lane-dense (rows, 512) layout; pad/slice cost one extra pass.
    lane = 512
    rows = pl.cdiv(total, lane)
    padded_total = rows * lane

    def _flat(a):
        a = a.reshape(-1)
        a = jnp.pad(a, (0, padded_total - total))
        return a.reshape(rows, lane)

    tm = _choose_tm(rows, lane, itemsize)
    spikes2, new_state2 = _run(
        _flat(input_tensor), _flat(state), thr, tm, lane, rows, dtype
    )
    spikes = spikes2.reshape(-1)[:total].reshape(orig_shape)
    new_state = new_state2.reshape(-1)[:total].reshape(orig_shape)
    return spikes, new_state


def _reference(input_tensor, state, threshold):
    state = state + input_tensor
    spikes = (state > threshold).astype(state.dtype)
    state = state - spikes * threshold
    return spikes, state


def _check(x, s, threshold):
    spikes, new_state = jax.jit(fast_if_cell)(x, s, threshold)
    jax.block_until_ready((spikes, new_state))
    ref_spikes, ref_state = _reference(x, s, threshold)
    assert spikes.shape == x.shape and new_state.shape == x.shape
    assert jnp.array_equal(spikes, ref_spikes), "spikes mismatch"
    assert jnp.allclose(new_state, ref_state, atol=1e-6), "state mismatch"


if __name__ == "__main__":
    key = jax.random.PRNGKey(0)
    threshold = jnp.float32(1.0)   # traced scalar, not static

    # Small shape consistent with the module (NCHW): copy-free reshape path.
    k1, k2, key = jax.random.split(key, 3)
    x = jax.random.normal(k1, (2, 4, 16, 16), dtype=jnp.float32)
    s = jax.random.normal(k2, (2, 4, 16, 16), dtype=jnp.float32)
    _check(x, s, threshold)

    # Non-lane-friendly spatial dims: tiny (1, total) full-extent block path.
    k1, k2, key = jax.random.split(key, 3)
    x = jax.random.normal(k1, (2, 3, 7, 7), dtype=jnp.float32)
    s = jax.random.normal(k2, (2, 3, 7, 7), dtype=jnp.float32)
    _check(x, s, threshold)

    # Medium, non-128-divisible size: exercises the padded fallback path.
    k1, k2, key = jax.random.split(key, 3)
    x = jax.random.normal(k1, (3, 7, 67, 67), dtype=jnp.float32)
    s = jax.random.normal(k2, (3, 7, 67, 67), dtype=jnp.float32)
    _check(x, s, threshold)

    # Larger shape: copy-free path with a multi-step pipelined grid (8 steps).
    k1, k2, key = jax.random.split(key, 3)
    x = jax.random.normal(k1, (4, 32, 64, 64), dtype=jnp.float32)
    s = jax.random.normal(k2, (4, 32, 64, 64), dtype=jnp.float32)
    _check(x, s, threshold)

    print("KERNEL_OK")
</pallas_src>

<mosaic_0001>
module attributes {stable_mosaic.version = 11 : i64} {
  func.func @_if_step_kernel(%arg0: i32, %arg1: memref<1x1xf32, #tpu.memory_space<smem>>, %arg2: memref<2x1024xf32, #tpu.memory_space<vmem>>, %arg3: memref<2x1024xf32, #tpu.memory_space<vmem>>, %arg4: memref<2x1024xf32, #tpu.memory_space<vmem>>, %arg5: memref<2x1024xf32, #tpu.memory_space<vmem>>) attributes {dimension_semantics = [#tpu.dimension_semantics<parallel>], iteration_bounds = array<i64: 1>, scalar_prefetch = 0 : i64, scratch_operands = 0 : i64, tpu.core_type = #tpu.core_type<tc>, window_params = [{transform_indices = @transform_0, window_bounds = array<i64: 1, 1>}, {transform_indices = @transform_1, window_bounds = array<i64: 2, 1024>}, {transform_indices = @transform_2, window_bounds = array<i64: 2, 1024>}, {transform_indices = @transform_3, window_bounds = array<i64: 2, 1024>}, {transform_indices = @transform_4, window_bounds = array<i64: 2, 1024>}]} {
    %c0 = arith.constant 0 : index
    %c0_0 = arith.constant 0 : index
    %0 = memref.load %arg1[%c0, %c0_0] : memref<1x1xf32, #tpu.memory_space<smem>>
    %c0_1 = arith.constant 0 : index
    %c0_2 = arith.constant 0 : index
    %1 = vector.load %arg3[%c0_1, %c0_2] : memref<2x1024xf32, #tpu.memory_space<vmem>>, vector<2x1024xf32>
    %c0_3 = arith.constant 0 : index
    %c0_4 = arith.constant 0 : index
    %2 = vector.load %arg2[%c0_3, %c0_4] : memref<2x1024xf32, #tpu.memory_space<vmem>>, vector<2x1024xf32>
    %3 = arith.addf %1, %2 : vector<2x1024xf32>
    %4 = vector.broadcast %0 : f32 to vector<2x1024xf32>
    %5 = arith.cmpf ogt, %3, %4 : vector<2x1024xf32>
    %6 = arith.extui %5 : vector<2x1024xi1> to vector<2x1024xi32>
    %7 = arith.sitofp %6 : vector<2x1024xi32> to vector<2x1024xf32>
    %c0_5 = arith.constant 0 : index
    %c0_6 = arith.constant 0 : index
    %8 = vector.load %arg4[%c0_5, %c0_6] : memref<2x1024xf32, #tpu.memory_space<vmem>>, vector<2x1024xf32>
    tpu.vector_store %arg4[%c0_5, %c0_6], %7 {strides = array<i32>} : memref<2x1024xf32, #tpu.memory_space<vmem>>, vector<2x1024xf32>,
    %9 = vector.broadcast %0 : f32 to vector<2x1024xf32>
    %10 = arith.mulf %7, %9 : vector<2x1024xf32>
    %11 = arith.subf %3, %10 : vector<2x1024xf32>
    %c0_7 = arith.constant 0 : index
    %c0_8 = arith.constant 0 : index
    %12 = vector.load %arg5[%c0_7, %c0_8] : memref<2x1024xf32, #tpu.memory_space<vmem>>, vector<2x1024xf32>
    tpu.vector_store %arg5[%c0_7, %c0_8], %11 {strides = array<i32>} : memref<2x1024xf32, #tpu.memory_space<vmem>>, vector<2x1024xf32>,
    return
  }
  func.func @transform_0(%arg0: i32) -> (i32, i32) {
    %c0_i32 = arith.constant 0 : i32
    %c0_i32_0 = arith.constant 0 : i32
    %c0_i32_1 = arith.constant 0 : i32
    return %c0_i32, %c0_i32_0 : i32, i32
  }
  func.func @transform_1(%arg0: i32) -> (i32, i32) {
    %c0_i32 = arith.constant 0 : i32
    %c0_i32_0 = arith.constant 0 : i32
    return %arg0, %c0_i32 : i32, i32
  }
  func.func @transform_2(%arg0: i32) -> (i32, i32) {
    %c0_i32 = arith.constant 0 : i32
    %c0_i32_0 = arith.constant 0 : i32
    return %arg0, %c0_i32 : i32, i32
  }
  func.func @transform_3(%arg0: i32) -> (i32, i32) {
    %c0_i32 = arith.constant 0 : i32
    %c0_i32_0 = arith.constant 0 : i32
    return %arg0, %c0_i32 : i32, i32
  }
  func.func @transform_4(%arg0: i32) -> (i32, i32) {
    %c0_i32 = arith.constant 0 : i32
    %c0_i32_0 = arith.constant 0 : i32
    return %arg0, %c0_i32 : i32, i32
  }
}

</mosaic_0001>

<llo_original>
// kernel: fast_if_cell.1
$region0: #{fast_if_cell.1}
  #allocation0 [shape = 'u32[]', space=smem, size = 0x4, offset = 0x4, fixed_abs, tag = 'smem constant byte address 0x4 - core index']
  #allocation1 [shape = 'u32[72,128]{1,0:T(1,128)}', space=vmem, size = 0x9000, scoped, tag = 'internal scratch']
  #allocation2 [shape = 'f32[1,1]{1,0:T(1,128)S(6)}', space=smem, size = 0x200, scoped, tag = 'scoped memory for fast_if_cell.1']
  %s0 = inlined_call_operand.<no memory space> [shape: f32[1,1], index: 0, kind: input, shape index: {}]
  %s1 = inlined_call_operand.vmem [shape: f32[2,1024], index: 1, kind: input, shape index: {}]
  %s2 = inlined_call_operand.vmem [shape: f32[2,1024], index: 2, kind: input, shape index: {}]
  %s3 = inlined_call_operand.vmem [shape: f32[2,1024], index: 3, kind: output, shape index: {0}]
  %s4 = inlined_call_operand.vmem [shape: f32[2,1024], index: 4, kind: output, shape index: {1}]
  %5 = xla_tuple %s3, %s4
  %s6 = sld [smem:[#allocation0]]
  $region30: #{fast_if_cell.1} parent=0
    _
  %s8 = ssub.s32 1, %s6
  %s9 = scalar_select 0, %s8, %s6
  %10 = sst [smem:[#allocation2]] %s0
  // Predicated region
  $region2: #{fast_if_cell.1} parent=0 // pred_check
    _
  $region3: #{fast_if_cell.1} parent=0 // pred_check_branch
    %12 = sbr.rel (0) target = $region5
  $region4: #{fast_if_cell.1} parent=0 // pred_region
    _
  $region5: #{fast_if_cell.1} parent=0 // pred_fallthru
    _
  // Predicated region
  $region6: #{fast_if_cell.1} parent=0 // pred_check
    _
  $region7: #{fast_if_cell.1} parent=0 // pred_check_branch
    %14 = sbr.rel (0) target = $region9
  $region8: #{fast_if_cell.1} parent=0 // pred_region
    _
  $region9: #{fast_if_cell.1} parent=0 // pred_fallthru
    _
  // Predicated region
  $region10: #{fast_if_cell.1} parent=0 // pred_check
    _
  $region11: #{fast_if_cell.1} parent=0 // pred_check_branch
    %16 = sbr.rel (0) target = $region13
  $region12: #{fast_if_cell.1} parent=0 // pred_region
    _
  $region13: #{fast_if_cell.1} parent=0 // pred_fallthru
    _
  %s17 = sld [smem:[#allocation2]]
  %v18 = vld [vmem:[%s2] sm:$0xff]
  %v19 = vld [vmem:[%s2 + $0x8] sm:$0xff]
  %v20 = vld [vmem:[%s1] sm:$0xff]
  %v21 = vld [vmem:[%s1 + $0x8] sm:$0xff]
  %v22 = vadd.f32 %v18, %v20
  %v23 = vadd.f32 %v19, %v21
  %v24 = vstv %s17
  %vm25 = vcmp.gt.f32.partialorder %v22, %v24
  %vm26 = vcmp.gt.f32.partialorder %v23, %v24
  %v27 = vsel %vm25, 1, 0
  %v28 = vsel %vm26, 1, 0
  %v29 = vcvt.s32.f32 %v27
  %v30 = vcvt.s32.f32 %v28
  %31 = vst [vmem:[%s3] sm:$0xff] %v29
  %32 = vst [vmem:[%s3 + $0x8] sm:$0xff] %v30
  %v33 = vmul.f32 %v29, %v24
  %v34 = vmul.f32 %v30, %v24
  %v35 = vsub.f32 %v22, %v33
  %v36 = vsub.f32 %v23, %v34
  %37 = vst [vmem:[%s4] sm:$0xff] %v35
  %38 = vst [vmem:[%s4 + $0x8] sm:$0xff] %v36
  // Predicated region
  $region14: #{fast_if_cell.1} parent=0 // pred_check
    _
  $region15: #{fast_if_cell.1} parent=0 // pred_check_branch
    %40 = sbr.rel (0) target = $region17
  $region16: #{fast_if_cell.1} parent=0 // pred_region
    _
  $region17: #{fast_if_cell.1} parent=0 // pred_fallthru
    _
  // Predicated region
  $region18: #{fast_if_cell.1} parent=0 // pred_check
    _
  $region19: #{fast_if_cell.1} parent=0 // pred_check_branch
    %42 = sbr.rel (0) target = $region21
  $region20: #{fast_if_cell.1} parent=0 // pred_region
    _
  $region21: #{fast_if_cell.1} parent=0 // pred_fallthru
    _
  // Predicated region
  $region22: #{fast_if_cell.1} parent=0 // pred_check
    _
  $region23: #{fast_if_cell.1} parent=0 // pred_check_branch
    %44 = sbr.rel (0) target = $region25
  $region24: #{fast_if_cell.1} parent=0 // pred_region
    _
  $region25: #{fast_if_cell.1} parent=0 // pred_fallthru
    _
  // Predicated region
  $region26: #{fast_if_cell.1} parent=0 // pred_check
    _
  $region27: #{fast_if_cell.1} parent=0 // pred_check_branch
    %46 = sbr.rel (0) target = $region29
  $region28: #{fast_if_cell.1} parent=0 // pred_region
    _
  $region29: #{fast_if_cell.1} parent=0 // pred_fallthru
    _

</llo_original>
